<compile_context>
chip_gen: v6e
topology: v6e:2x2x1
jax: 0.10.0
libtpu: 0.0.40
codegen_flags: <defaults>
</compile_context>

<pallas_src>
import jax
import jax.numpy as jnp
from jax.experimental import pallas as pl
from jax.experimental.pallas import tpu as pltpu


def _round_up(x, m):
    return ((x + m - 1) // m) * m


def _ctc_linear_kernel(x_ref, w_ref, b_ref, o_ref):
    # x_ref: (tm, D) bf16   w_ref: (D, tn) bf16
    # b_ref: (1, tn) f32    o_ref: (tm, tn) out dtype (bf16 by default)
    acc = jnp.dot(x_ref[...], w_ref[...], preferred_element_type=jnp.float32)
    o_ref[...] = (acc + b_ref[...]).astype(o_ref.dtype)


def ctc_prediction(contextual_feature, weight_t, bias, *, num_class=None,
                   out_dtype=jnp.bfloat16, tm=512, tn=512,
                   min_rows_for_pallas=1024, force_pallas=False,
                   vmem_limit_bytes=32 * 1024 * 1024):
    """Linear head  [B, T, D] @ [D, C_pad] + [C_pad]  ->  [B, T, num_class].

    `weight_t` is pre-transposed [D, C_pad] (C padded to a multiple of 256,
    bf16); `bias` is [C_pad] f32.  Output is sliced back to `num_class` only
    when padding occurred.
    """
    B, T, D = contextual_feature.shape
    Dw, C_pad = weight_t.shape
    assert Dw == D
    assert C_pad % 256 == 0, "pad the class dim to a multiple of 256 at init"
    if num_class is None:
        num_class = C_pad

    rows = B * T
    # Stream activations as bf16 (halves the dominant x read).  No-op if the
    # input is already bf16; if f32 the cast is fused into the pallas_call
    # input pipeline via allow_input_fusion below.
    x2d = contextual_feature.reshape(rows, D).astype(jnp.bfloat16)
    bias2d = bias.reshape(1, C_pad).astype(jnp.float32)

    # Tiny-problem fast path: pallas_call launch + DMA setup dwarfs the GEMM.
    # Same numerics as the kernel (bf16 MXU, f32 accumulate, f32 bias).
    if (not force_pallas) and rows < min_rows_for_pallas:
        out = jnp.dot(x2d, weight_t, preferred_element_type=jnp.float32) + bias2d
        out = out.astype(out_dtype)
        return out[:, :num_class].reshape(B, T, num_class)

    # --- Row padding: only to the 8-sublane granule (NOT to a multiple of tm)
    rows_pad = _round_up(rows, 8)
    if rows_pad != rows:
        x2d = jnp.pad(x2d, ((0, rows_pad - rows), (0, 0)))

    # --- Tile selection ---------------------------------------------------
    # Row tile: as large as requested, 8-aligned, never bigger than the rows.
    tm = max(8, min(_round_up(tm, 8), rows_pad))
    # Guarantee >= 4 row tiles when the problem is big enough so v7x's two
    # TensorCores both get balanced work (megacore / 2-TC sharding).
    min_row_tiles = 4
    if rows_pad >= min_row_tiles * 8:
        tm = min(tm, max(8, _round_up(pl.cdiv(rows_pad, min_row_tiles), 8)))

    # Class tile: multiple of 256 (full MXU width on v6e/v7x) dividing C_pad.
    tn = min(max(256, (tn // 256) * 256), C_pad)
    while C_pad % tn != 0:
        tn -= 256

    num_i = pl.cdiv(rows_pad, tm)   # row tiles (last one may be partial)
    num_j = C_pad // tn             # class tiles

    # --- Grid order: re-stream the cheaper operand when both axes are tiled.
    # Default (rows outer / classes inner) keeps the x tile resident across
    # the inner loop; if x is smaller than W, flip so W is loaded only once.
    rows_inner = (num_i > 1) and (num_j > 1) and (rows_pad * D < D * C_pad)
    if rows_inner:
        grid = (num_j, num_i)
        x_map = lambda j, i: (i, 0)
        w_map = lambda j, i: (0, j)
        b_map = lambda j, i: (0, j)
        o_map = lambda j, i: (i, j)
    else:
        grid = (num_i, num_j)
        x_map = lambda i, j: (i, 0)
        w_map = lambda i, j: (0, j)
        b_map = lambda i, j: (0, j)
        o_map = lambda i, j: (i, j)

    out_bytes = jnp.dtype(out_dtype).itemsize
    cost = pl.CostEstimate(
        flops=2 * rows_pad * D * C_pad,
        transcendentals=0,
        bytes_accessed=(rows_pad * D * 2 + D * C_pad * 2 + C_pad * 4
                        + rows_pad * C_pad * out_bytes),
    )

    out2d = pl.pallas_call(
        _ctc_linear_kernel,
        out_shape=jax.ShapeDtypeStruct((rows_pad, C_pad), out_dtype),
        grid_spec=pl.GridSpec(
            grid=grid,
            in_specs=[
                pl.BlockSpec((tm, D), x_map),    # row tile of x (bf16)
                pl.BlockSpec((D, tn), w_map),    # column tile of W (bf16)
                pl.BlockSpec((1, tn), b_map),    # bias slice (f32)
            ],
            out_specs=pl.BlockSpec((tm, tn), o_map),
        ),
        compiler_params=pltpu.CompilerParams(
            # Output tile is unique per grid point -> both axes independent;
            # lets the two v7x TensorCores split the grid.
            dimension_semantics=("parallel", "parallel"),
            # Tiles are a few MiB double-buffered; 32 MiB is safe on all gens
            # (v7x physical VMEM is only 64 MiB; raise on v5e/v6e if desired).
            vmem_limit_bytes=vmem_limit_bytes,
            # Let the f32->bf16 cast (and any reshape) of x fuse into the
            # pallas_call input instead of materializing an extra HBM pass.
            allow_input_fusion=[True, False, False],
        ),
        cost_estimate=cost,
    )(x2d, weight_t, bias2d)

    # Slice only when padding actually occurred (avoids an extra HBM
    # read+write of the logits on already-aligned shapes).
    if rows_pad != rows or C_pad != num_class:
        out2d = out2d[:rows, :num_class]
    return out2d.reshape(B, T, num_class)


class PredictBuilderPallas:
    """JAX/Pallas re-implementation of PredictBuilder (CTC branch)."""

    def __init__(self, flow, config, SequenceModeling_output, *, force_pallas=False):
        self.flow = flow
        self.config = config
        self.force_pallas = force_pallas
        if flow["Pred"] == "CTC":
            D = SequenceModeling_output
            C = config["num_class"]
            self.num_class = C
            # Class dim padded once to a multiple of 256 (lane-dense, and full
            # MXU width on v6e/v7x); the wrapper slices back to num_class.
            C_pad = _round_up(C, 256)
            # Deterministic synthetic init (mimics nn.Linear parameter shapes:
            # weight [C, D], bias [C]); stored pre-transposed & padded as
            # [D, C_pad] in bf16, bias padded to [C_pad] in f32.
            kw, kb = jax.random.split(jax.random.PRNGKey(42))
            scale = 1.0 / jnp.sqrt(jnp.float32(D))
            w = jax.random.uniform(kw, (C, D), jnp.float32, -scale, scale)
            b = jax.random.uniform(kb, (C,), jnp.float32, -scale, scale)
            self.weight_t = jnp.pad(w.T, ((0, 0), (0, C_pad - C))).astype(jnp.bfloat16)
            self.bias = jnp.pad(b, (0, C_pad - C)).astype(jnp.float32)
        else:
            # TODO(synk): 'Attn'/'Attnv2'/'Multistage_Attn'/'TFM' branches need the
            # external Attention / TransformerPrediction modules (not defined here).
            raise ValueError("Only the CTC prediction branch is implemented")

    def __call__(self, contextual_feature, text=None, is_train=True,
                 is_test=False, rtl_text=None):
        addition_outputs = {}
        decoder_attn = None
        logits = None
        prediction = None
        if self.flow["Pred"] == "CTC":
            prediction = ctc_prediction(
                contextual_feature, self.weight_t, self.bias,
                num_class=self.num_class, force_pallas=self.force_pallas)
        return prediction, logits, decoder_attn, addition_outputs


if __name__ == "__main__":
    # Small shapes: batch=2, seq=8, hidden(SequenceModeling_output)=32, num_class=16
    B, T, D, C = 2, 8, 32, 16
    flow = {"Pred": "CTC"}
    config = {"num_class": C, "batch_max_length": T, "device": "tpu"}

    # force_pallas=True so the tiny test shape exercises the Pallas kernel
    # (real workloads use the auto-dispatch threshold).
    builder = PredictBuilderPallas(flow, config, SequenceModeling_output=D,
                                   force_pallas=True)

    key = jax.random.PRNGKey(0)
    contextual_feature = jax.random.normal(key, (B, T, D), dtype=jnp.float32)
    text = jnp.zeros((B, T), dtype=jnp.int32)  # unused for CTC, kept for API parity

    prediction, logits, decoder_attn, addition_outputs = builder(
        contextual_feature, text, is_train=True
    )
    prediction = jax.block_until_ready(prediction)

    # Sanity check against a plain-JAX reference with the same numerics
    # (bf16 inputs/weights, f32 accumulation, f32 bias, bf16 output).
    x2d = contextual_feature.reshape(B * T, D).astype(jnp.bfloat16)
    ref = (jnp.dot(x2d, builder.weight_t, preferred_element_type=jnp.float32)
           + builder.bias)
    ref = ref.astype(jnp.bfloat16)[:, :C].reshape(B, T, C)

    assert prediction.shape == (B, T, C), prediction.shape
    assert prediction.dtype == jnp.bfloat16, prediction.dtype
    assert jnp.allclose(prediction.astype(jnp.float32), ref.astype(jnp.float32),
                        atol=2e-2, rtol=2e-2)

    print("KERNEL_OK")
</pallas_src>

<mosaic_0001>
module attributes {stable_mosaic.version = 11 : i64} {
  func.func @_ctc_linear_kernel(%arg0: i32, %arg1: i32, %arg2: memref<16x32xbf16, #tpu.memory_space<vmem>>, %arg3: memref<32x256xbf16, #tpu.memory_space<vmem>>, %arg4: memref<1x256xf32, #tpu.memory_space<vmem>>, %arg5: memref<16x256xbf16, #tpu.memory_space<vmem>>) attributes {dimension_semantics = [#tpu.dimension_semantics<parallel>, #tpu.dimension_semantics<parallel>], iteration_bounds = array<i64: 1, 1>, scalar_prefetch = 0 : i64, scratch_operands = 0 : i64, tpu.core_type = #tpu.core_type<tc>, window_params = [{transform_indices = @transform_0, window_bounds = array<i64: 16, 32>}, {transform_indices = @transform_1, window_bounds = array<i64: 32, 256>}, {transform_indices = @transform_2, window_bounds = array<i64: 1, 256>}, {transform_indices = @transform_3, window_bounds = array<i64: 16, 256>}]} {
    %c0 = arith.constant 0 : index
    %c0_0 = arith.constant 0 : index
    %0 = vector.load %arg2[%c0, %c0_0] : memref<16x32xbf16, #tpu.memory_space<vmem>>, vector<16x32xbf16>
    %c0_1 = arith.constant 0 : index
    %c0_2 = arith.constant 0 : index
    %1 = vector.load %arg3[%c0_1, %c0_2] : memref<32x256xbf16, #tpu.memory_space<vmem>>, vector<32x256xbf16>
    %cst = arith.constant dense<0.000000e+00> : vector<16x256xf32>
    %2 = tpu.matmul %0, %1, %cst {dimension_numbers = #tpu.dot_dimension_numbers<[1], [0], [0], [1], [0, 0, 1, 1], [], []>} : vector<16x32xbf16>, vector<32x256xbf16>, vector<16x256xf32> -> vector<16x256xf32>
    %c0_3 = arith.constant 0 : index
    %c0_4 = arith.constant 0 : index
    %3 = vector.load %arg4[%c0_3, %c0_4] : memref<1x256xf32, #tpu.memory_space<vmem>>, vector<1x256xf32>
    %4 = vector.broadcast %3 : vector<1x256xf32> to vector<16x256xf32>
    %5 = arith.addf %2, %4 : vector<16x256xf32>
    %6 = arith.truncf %5 : vector<16x256xf32> to vector<16x256xbf16>
    %c0_5 = arith.constant 0 : index
    %c0_6 = arith.constant 0 : index
    %7 = vector.load %arg5[%c0_5, %c0_6] : memref<16x256xbf16, #tpu.memory_space<vmem>>, vector<16x256xbf16>
    tpu.vector_store %arg5[%c0_5, %c0_6], %6 {strides = array<i32>} : memref<16x256xbf16, #tpu.memory_space<vmem>>, vector<16x256xbf16>,
    return
  }
  func.func @transform_0(%arg0: i32, %arg1: i32) -> (i32, i32) {
    %c0_i32 = arith.constant 0 : i32
    %c0_i32_0 = arith.constant 0 : i32
    return %arg0, %c0_i32 : i32, i32
  }
  func.func @transform_1(%arg0: i32, %arg1: i32) -> (i32, i32) {
    %c0_i32 = arith.constant 0 : i32
    %c0_i32_0 = arith.constant 0 : i32
    return %c0_i32, %arg1 : i32, i32
  }
  func.func @transform_2(%arg0: i32, %arg1: i32) -> (i32, i32) {
    %c0_i32 = arith.constant 0 : i32
    %c0_i32_0 = arith.constant 0 : i32
    return %c0_i32, %arg1 : i32, i32
  }
  func.func @transform_3(%arg0: i32, %arg1: i32) -> (i32, i32) {
    %c0_i32 = arith.constant 0 : i32
    return %arg0, %arg1 : i32, i32
  }
}

</mosaic_0001>

<llo_original>
// kernel: tpu_custom_call.1
$region0: #{tpu_custom_call.1}
  #allocation0 [shape = 'u32[]', space=smem, size = 0x4, offset = 0x4, fixed_abs, tag = 'smem constant byte address 0x4 - core index']
  #allocation1 [shape = 'u32[144,128]{1,0:T(1,128)}', space=vmem, size = 0x12000, scoped, tag = 'internal scratch']
  %s0 = inlined_call_operand.hbm [shape: bf16[16,32], index: 0, kind: input, shape index: {}]
  %s1 = inlined_call_operand.hbm [shape: bf16[32,256], index: 1, kind: input, shape index: {}]
  %s2 = inlined_call_operand.vmem [shape: f32[1,256], index: 2, kind: input, shape index: {}]
  %s3 = inlined_call_operand.hbm [shape: bf16[16,256], index: 3, kind: output, shape index: {}]
  %s4 = sld [smem:[#allocation0]]
  $region30: #{tpu_custom_call.1} parent=0
    _
  %s6 = ssub.s32 1, %s4
  %s7 = scalar_select 0, %s6, %s4
  $region1: #{tpu_custom_call.1} parent=0
    #allocation2 [shape = 'u8[4096]{0}', space=vmem, size = 0x1000, scoped, tag = 'input window, operand 0, single buffered']
    #allocation3 [shape = 's32[1]{0}', space=sflag, size = 0x4, scoped, tag = 'scoped memory for tpu_custom_call.1']
    #allocation4 [shape = 's32[1]{0}', space=sflag, size = 0x4, scoped, tag = 'scoped memory for tpu_custom_call.1']
    #allocation5 [shape = 'u8[16384]{0}', space=vmem, size = 0x4000, scoped, tag = 'input window, operand 1, single buffered']
    #allocation6 [shape = 's32[1]{0}', space=sflag, size = 0x4, scoped, tag = 'scoped memory for tpu_custom_call.1']
    #allocation7 [shape = 'u8[8192]{0}', space=vmem, size = 0x2000, scoped, tag = 'output window, operand 0, single buffered']
    %8 = vsyncpa [#allocation3], 0
    %9 = vsyncpa [#allocation6], 0
    %10 = vsyncpa [#allocation4], 0
    // Predicated region
    $region2: #{tpu_custom_call.1} parent=1 // pred_check
      _
    $region3: #{tpu_custom_call.1} parent=1 // pred_check_branch
      %12 = sbr.rel (0) target = $region5
    $region4: #{tpu_custom_call.1} parent=1 // pred_region
      %s14 = ssub.s32 128, 128
      %15 = vsyncadd [#allocation3], %s14
      %s16 = sshll.u32 [#allocation2], 4
      %s17 = int_to_ptr.vmem [resolvable:$true] %s16
      %22 = dma.hbm_to_vmem [thread:$0]  %s0, 128, %s17, [#allocation3], 64, 64, 4
    $region5: #{tpu_custom_call.1} parent=1 // pred_fallthru
      _
    // Predicated region
    $region6: #{tpu_custom_call.1} parent=1 // pred_check
      _
    $region7: #{tpu_custom_call.1} parent=1 // pred_check_branch
      %24 = sbr.rel (0) target = $region9
    $region8: #{tpu_custom_call.1} parent=1 // pred_region
      %s26 = ssub.s32 512, 512
      %27 = vsyncadd [#allocation6], %s26
      %s28 = sshll.u32 [#allocation5], 4
      %s29 = int_to_ptr.vmem [resolvable:$true] %s28
      %34 = dma.hbm_to_vmem [thread:$0]  %s1, 512, %s29, [#allocation6], 128, 128, 8
    $region9: #{tpu_custom_call.1} parent=1 // pred_fallthru
      _
    // Predicated region
    $region10: #{tpu_custom_call.1} parent=1 // pred_check
      _
    $region11: #{tpu_custom_call.1} parent=1 // pred_check_branch
      %36 = sbr.rel (0) target = $region13
    $region12: #{tpu_custom_call.1} parent=1 // pred_region
      _
    $region13: #{tpu_custom_call.1} parent=1 // pred_fallthru
      _
    // Predicated region
    $region14: #{tpu_custom_call.1} parent=1 // pred_check
      _
    $region15: #{tpu_custom_call.1} parent=1 // pred_check_branch
      %38 = sbr.rel (0) target = $region17
    $region16: #{tpu_custom_call.1} parent=1 // pred_region
      %39 = dma.done [#allocation3], 128
    $region17: #{tpu_custom_call.1} parent=1 // pred_fallthru
      _
    // Predicated region
    $region18: #{tpu_custom_call.1} parent=1 // pred_check
      _
    $region19: #{tpu_custom_call.1} parent=1 // pred_check_branch
      %41 = sbr.rel (0) target = $region21
    $region20: #{tpu_custom_call.1} parent=1 // pred_region
      %42 = dma.done [#allocation6], 512
    $region21: #{tpu_custom_call.1} parent=1 // pred_fallthru
      _
    %v44 = vld [vmem:[#allocation2] sm:$0xf]
    %v45 = vld [vmem:[#allocation2 + $0x4] sm:$0xf]
    %v46 = vld [vmem:[#allocation5] sm:$0xff]
    %v47 = vld [vmem:[#allocation5 + $0x8] sm:$0xff]
    %v48 = vld [vmem:[#allocation5 + $0x10] sm:$0xff]
    %v49 = vld [vmem:[#allocation5 + $0x18] sm:$0xff]
    %v50 = vld [vmem:[%s2] sm:$0x3]
    %v52 = vlaneseq
    %v53 = vshrl.u32 %v52, 7
    %v54 = vsub.s32 0, %v53
    %v55 = vrot.slane %v50, %v54
    %v56 = vlaneseq
    %v57 = vshrl.u32 %v56, 7
    %v58 = vsub.s32 1, %v57
    %v59 = vrot.slane %v50, %v58
    %v64 = vunpack.c.l.b16 %v44
    %v65 = vunpack.c.l.b16 %v45
    %v66 = vpack.c.b16 %v65, %v64
    %v71 = vunpack.c.l.b16 %v46
    %v72 = vunpack.c.h.b16 %v46
    %v73 = vunpack.c.l.b16 %v47
    %v74 = vunpack.c.h.b16 %v47
    %v75 = vunpack.c.l.b16 %v48
    %v76 = vunpack.c.h.b16 %v48
    %v77 = vunpack.c.l.b16 %v49
    %v78 = vunpack.c.h.b16 %v49
    %v79 = vpack.c.b16 %v73, %v71
    %v80 = vpack.c.b16 %v74, %v72
    %v81 = vpack.c.b16 %v77, %v75
    %v82 = vpack.c.b16 %v78, %v76
    %vm87 = vcmask 261120
    %v89 = vsel %vm87, %v66, 0
    %91 = vmatprep.subr.bf16.mxu0 0
    %92 = vmatpush1.bf16.msra.mxu0 0
    %93 = vmatprep.subr.bf16.mxu0 0
    %94 = vmatpush1.bf16.msra.mxu0 0
    %95 = vmatprep.subr.bf16.mxu0 0
    %96 = vmatpush1.bf16.msra.mxu0 0
    %97 = vmatprep.subr.bf16.mxu0 0
    %98 = vmatpush1.bf16.msra.mxu0 0
    %99 = vmatprep.subr.bf16.mxu0 0
    %100 = vmatpush1.bf16.msra.mxu0 0
    %101 = vmatprep.subr.bf16.mxu0 0
    %102 = vmatpush1.bf16.msra.mxu0 0
    %103 = vmatprep.subr.bf16.mxu0 %v82
    %104 = vmatpush1.bf16.msra.mxu0 %v81
    %105 = vmatprep.subr.bf16.mxu0 %v80
    %106 = vmatpush1.bf16.msra.mxu0 %v79
    %107 = vmatprep.subr.bf16.mxu0 0
    %108 = vmatpush2.bf16.msra.mxu0 0
    %109 = vmatprep.subr.bf16.mxu0 0
    %110 = vmatpush2.bf16.msra.mxu0 0
    %111 = vmatprep.subr.bf16.mxu0 0
    %112 = vmatpush2.bf16.msra.mxu0 0
    %113 = vmatprep.subr.bf16.mxu0 0
    %114 = vmatpush2.bf16.msra.mxu0 0
    %115 = vmatprep.subr.bf16.mxu0 0
    %116 = vmatpush2.bf16.msra.mxu0 0
    %117 = vmatprep.subr.bf16.mxu0 0
    %118 = vmatpush2.bf16.msra.mxu0 0
    %119 = vmatprep.subr.bf16.mxu0 0
    %120 = vmatpush2.bf16.msra.mxu0 0
    %121 = vmatprep.subr.bf16.mxu0 0
    %122 = vmatpush2.bf16.msra.mxu0 0
    %123 = vmatprep.mubr.bf16.mxu0 0
    %124 = vmatmul.mubr.bf16.gmra.mxu0 %v89
    %v125 = vpop.f32.mrf.mxu0
    %v126 = vadd.f32 %v55, %v125
    %v127 = vpop.f32.mrf.mxu0
    %v128 = vadd.f32 %v59, %v127
    %v129 = vpop.f32.mrf.mxu0
    %v130 = vadd.f32 %v55, %v129
    %v131 = vpop.f32.mrf.mxu0
    %v132 = vadd.f32 %v59, %v131
    %133 = vdwg.mxu0
    %v134 = vpack.c.bf16 %v130, %v126
    %v135 = vpack.c.bf16 %v132, %v128
    %v138 = vunpack.c.l.b16 %v134
    %v139 = vunpack.c.l.b16 %v135
    %v140 = vunpack.c.h.b16 %v134
    %v141 = vunpack.c.h.b16 %v135
    %v142 = vpack.c.b16 %v139, %v138
    %v143 = vpack.c.b16 %v141, %v140
    %146 = vst [vmem:[#allocation7] sm:$0xff] %v142
    %147 = vst [vmem:[#allocation7 + $0x8] sm:$0xff] %v143
    // Predicated region
    $region22: #{tpu_custom_call.1} parent=1 // pred_check
      _
    $region23: #{tpu_custom_call.1} parent=1 // pred_check_branch
      %149 = sbr.rel (0) target = $region25
    $region24: #{tpu_custom_call.1} parent=1 // pred_region
      %s151 = ssub.s32 256, 256
      %152 = vsyncadd [#allocation4], %s151
      %s153 = sshll.u32 [#allocation7], 4
      %s154 = int_to_ptr.vmem [resolvable:$true] %s153
      %159 = dma.vmem_to_hbm [thread:$0]  %s154, 256, %s3, [#allocation4], 128, 128, 8
    $region25: #{tpu_custom_call.1} parent=1 // pred_fallthru
      _
    // Predicated region
    $region26: #{tpu_custom_call.1} parent=1 // pred_check
      _
    $region27: #{tpu_custom_call.1} parent=1 // pred_check_branch
      %161 = sbr.rel (0) target = $region29
    $region28: #{tpu_custom_call.1} parent=1 // pred_region
      %162 = dma.done [#allocation4], 256
    $region29: #{tpu_custom_call.1} parent=1 // pred_fallthru
      _
    %163 = vsyncpa [#allocation3], 1
    %164 = vsyncpa [#allocation6], 1
    %165 = vsyncpa [#allocation4], 1

</llo_original>
